<compile_context>
chip_gen: v6e
topology: v6e:2x2x1
jax: 0.10.0
libtpu: 0.0.40
codegen_flags: <defaults>
</compile_context>

<pallas_src>
import functools

import jax
import jax.numpy as jnp
from jax import lax
from jax.experimental import pallas as pl
from jax.experimental.pallas import tpu as pltpu


def _round_up(x, m):
    return ((x + m - 1) // m) * m


def _kernel(x_ref, r_ref, w_ref, b_ref, g_ref, bt_ref, o_ref, *, eps):
    # ---- dense: single-pass bf16 MXU matmul, f32 accumulation ----
    y = jnp.dot(x_ref[...].astype(jnp.bfloat16),
                w_ref[...].astype(jnp.bfloat16),
                preferred_element_type=jnp.float32)
    # ---- bias + (dropout = identity at inference) + residual, in f32 ----
    y = y + b_ref[...].astype(jnp.float32) + r_ref[...].astype(jnp.float32)
    # ---- LayerNorm over the lane (hidden) axis, statistics in f32 ----
    mean = jnp.mean(y, axis=-1, keepdims=True)
    yc = y - mean
    var = jnp.mean(yc * yc, axis=-1, keepdims=True)
    inv = lax.rsqrt(var + eps)
    o_ref[...] = ((yc * inv) * g_ref[...].astype(jnp.float32)
                  + bt_ref[...].astype(jnp.float32)).astype(o_ref.dtype)


def align_text_self_output(hidden_states, input_tensor, params, *, eps=1e-12,
                           block_rows=256):
    """Fused dense + bias + residual + LayerNorm (dropout = identity, inference)."""
    B, S, H = hidden_states.shape
    M = B * S
    out_dtype = hidden_states.dtype

    # Stream operands in their native dtype (no whole-array f32 round trips).
    x2d = hidden_states.reshape(M, H)
    r2d = input_tensor.reshape(M, H).astype(out_dtype)   # aliased to the output
    w = params["w"]                 # (H, H): PyTorch (out,in) weight, pre-transposed once
    b = params["b"].reshape(1, H)
    gamma = params["gamma"].reshape(1, H)
    beta = params["beta"].reshape(1, H)

    # Row tile: multiple of 8 sublanes; pad M up instead of shrinking the tile.
    Tm = _round_up(max(8, min(block_rows, _round_up(M, 8))), 8)
    M_pad = _round_up(M, Tm)
    if M_pad != M:
        pad = ((0, M_pad - M), (0, 0))
        x2d = jnp.pad(x2d, pad)
        r2d = jnp.pad(r2d, pad)
    grid = (M_pad // Tm,)

    itemsize = lambda a: jnp.dtype(a.dtype).itemsize
    bytes_accessed = (
        M_pad * H * (itemsize(x2d) + itemsize(r2d) + jnp.dtype(out_dtype).itemsize)
        + H * H * itemsize(w)
        + H * (itemsize(b) + itemsize(gamma) + itemsize(beta)))
    cost = pl.CostEstimate(
        flops=2 * M_pad * H * H + 8 * M_pad * H,   # single-pass matmul + LN/adds
        transcendentals=M_pad,                     # one rsqrt per row
        bytes_accessed=int(bytes_accessed))

    out2d = pl.pallas_call(
        functools.partial(_kernel, eps=eps),
        out_shape=jax.ShapeDtypeStruct((M_pad, H), out_dtype),
        grid_spec=pltpu.PrefetchScalarGridSpec(
            num_scalar_prefetch=0,
            grid=grid,
            in_specs=[
                pl.BlockSpec((Tm, H), lambda i: (i, 0)),   # hidden_states tile
                pl.BlockSpec((Tm, H), lambda i: (i, 0)),   # residual tile
                pl.BlockSpec((H, H), lambda i: (0, 0)),    # weight (VMEM-resident)
                pl.BlockSpec((1, H), lambda i: (0, 0)),    # bias
                pl.BlockSpec((1, H), lambda i: (0, 0)),    # LN gamma
                pl.BlockSpec((1, H), lambda i: (0, 0)),    # LN beta
            ],
            out_specs=pl.BlockSpec((Tm, H), lambda i: (i, 0)),
        ),
        compiler_params=pltpu.CompilerParams(
            dimension_semantics=("parallel",),      # rows independent -> v7x dual-TC
            vmem_limit_bytes=48 * 1024 * 1024,      # below v7x 64 MiB physical, above v5e default
        ),
        input_output_aliases={1: 0},                # reuse residual HBM buffer for output
        cost_estimate=cost,
    )(x2d, r2d, w, b, gamma, beta)

    return out2d[:M].reshape(B, S, H)


# ---------------- pure-JAX f32 reference (PyTorch semantics) ----------------
def reference_jax(hidden_states, input_tensor, params, *, eps=1e-12):
    x = hidden_states.astype(jnp.float32)
    r = input_tensor.astype(jnp.float32)
    w = params["w"].astype(jnp.float32)
    y = jnp.einsum("bsh,hd->bsd", x, w) + params["b"].astype(jnp.float32)
    # dropout = identity at inference
    y = y + r
    mean = jnp.mean(y, axis=-1, keepdims=True)
    yc = y - mean
    var = jnp.mean(yc * yc, axis=-1, keepdims=True)
    return (yc * lax.rsqrt(var + eps) * params["gamma"].astype(jnp.float32)
            + params["beta"].astype(jnp.float32))


def make_params(key, hidden_size):
    k1, k2, k3, k4 = jax.random.split(key, 4)
    # nn.Linear weight (out,in) is transposed once at conversion time -> (in, out).
    return {
        "w": (0.05 * jax.random.normal(k1, (hidden_size, hidden_size), jnp.float32)
              ).astype(jnp.bfloat16),
        "b": (0.1 * jax.random.normal(k2, (hidden_size,), jnp.float32)
              ).astype(jnp.bfloat16),
        "gamma": jax.random.uniform(k3, (hidden_size,), jnp.float32, 0.5, 1.5),
        "beta": 0.1 * jax.random.normal(k4, (hidden_size,), jnp.float32),
    }


if __name__ == "__main__":
    key = jax.random.PRNGKey(0)
    kh, kr, kp = jax.random.split(key, 3)
    H = 128
    eps = 1e-12
    params = make_params(kp, H)

    # Case 1: aligned token count (B*S is a multiple of the row tile) -> grid=(2,).
    B, S = 2, 64
    hidden_states = jax.random.normal(kh, (B, S, H), jnp.float32).astype(jnp.bfloat16)
    input_tensor = jax.random.normal(kr, (B, S, H), jnp.float32).astype(jnp.bfloat16)
    out = align_text_self_output(hidden_states, input_tensor, params, eps=eps,
                                 block_rows=64)
    out = jax.block_until_ready(out)
    ref = reference_jax(hidden_states, input_tensor, params, eps=eps)
    assert out.shape == (B, S, H) and out.dtype == jnp.bfloat16
    err = float(jnp.max(jnp.abs(out.astype(jnp.float32) - ref)))
    assert err < 5e-2, err

    # Case 2: awkward token count (exercises the pad-M path: M=74 -> padded to 128).
    B2, S2 = 2, 37
    hs2 = jax.random.normal(jax.random.PRNGKey(1), (B2, S2, H),
                            jnp.float32).astype(jnp.bfloat16)
    it2 = jax.random.normal(jax.random.PRNGKey(2), (B2, S2, H),
                            jnp.float32).astype(jnp.bfloat16)
    out2 = jax.block_until_ready(
        align_text_self_output(hs2, it2, params, eps=eps, block_rows=64))
    ref2 = reference_jax(hs2, it2, params, eps=eps)
    err2 = float(jnp.max(jnp.abs(out2.astype(jnp.float32) - ref2)))
    assert out2.shape == (B2, S2, H) and err2 < 5e-2, err2

    print("KERNEL_OK")
</pallas_src>

<mosaic_0001>
module attributes {stable_mosaic.version = 11 : i64} {
  func.func @_kernel(%arg0: i32, %arg1: memref<64x128xbf16, #tpu.memory_space<vmem>>, %arg2: memref<64x128xbf16, #tpu.memory_space<vmem>>, %arg3: memref<128x128xbf16, #tpu.memory_space<vmem>>, %arg4: memref<1x128xbf16, #tpu.memory_space<vmem>>, %arg5: memref<1x128xf32, #tpu.memory_space<vmem>>, %arg6: memref<1x128xf32, #tpu.memory_space<vmem>>, %arg7: memref<64x128xbf16, #tpu.memory_space<vmem>>) attributes {dimension_semantics = [#tpu.dimension_semantics<parallel>], iteration_bounds = array<i64: 2>, scalar_prefetch = 0 : i64, scratch_operands = 0 : i64, tpu.core_type = #tpu.core_type<tc>, window_params = [{transform_indices = @transform_0, window_bounds = array<i64: 64, 128>}, {transform_indices = @transform_1, window_bounds = array<i64: 64, 128>}, {pipeline_mode = #tpu.pipeline_mode<synchronous>, transform_indices = @transform_2, window_bounds = array<i64: 128, 128>}, {pipeline_mode = #tpu.pipeline_mode<synchronous>, transform_indices = @transform_3, window_bounds = array<i64: 1, 128>}, {pipeline_mode = #tpu.pipeline_mode<synchronous>, transform_indices = @transform_4, window_bounds = array<i64: 1, 128>}, {pipeline_mode = #tpu.pipeline_mode<synchronous>, transform_indices = @transform_5, window_bounds = array<i64: 1, 128>}, {transform_indices = @transform_6, window_bounds = array<i64: 64, 128>}]} {
    %c0 = arith.constant 0 : index
    %c0_0 = arith.constant 0 : index
    %0 = vector.load %arg1[%c0, %c0_0] : memref<64x128xbf16, #tpu.memory_space<vmem>>, vector<64x128xbf16>
    %c0_1 = arith.constant 0 : index
    %c0_2 = arith.constant 0 : index
    %1 = vector.load %arg3[%c0_1, %c0_2] : memref<128x128xbf16, #tpu.memory_space<vmem>>, vector<128x128xbf16>
    %cst = arith.constant dense<0.000000e+00> : vector<64x128xf32>
    %2 = tpu.matmul %0, %1, %cst {dimension_numbers = #tpu.dot_dimension_numbers<[1], [0], [0], [1], [0, 0, 1, 1], [], []>} : vector<64x128xbf16>, vector<128x128xbf16>, vector<64x128xf32> -> vector<64x128xf32>
    %c0_3 = arith.constant 0 : index
    %c0_4 = arith.constant 0 : index
    %3 = vector.load %arg4[%c0_3, %c0_4] : memref<1x128xbf16, #tpu.memory_space<vmem>>, vector<1x128xbf16>
    %4 = arith.extf %3 : vector<1x128xbf16> to vector<1x128xf32>
    %5 = vector.broadcast %4 : vector<1x128xf32> to vector<64x128xf32>
    %6 = arith.addf %2, %5 : vector<64x128xf32>
    %c0_5 = arith.constant 0 : index
    %c0_6 = arith.constant 0 : index
    %7 = vector.load %arg2[%c0_5, %c0_6] : memref<64x128xbf16, #tpu.memory_space<vmem>>, vector<64x128xbf16>
    %8 = arith.extf %7 : vector<64x128xbf16> to vector<64x128xf32>
    %9 = arith.addf %6, %8 : vector<64x128xf32>
    %cst_7 = arith.constant dense<0.000000e+00> : vector<64xf32>
    %10 = vector.multi_reduction <add>, %9, %cst_7 [1] : vector<64x128xf32> to vector<64xf32>
    %11 = vector.shape_cast %10 : vector<64xf32> to vector<64x1xf32>
    %cst_8 = arith.constant 1.280000e+02 : f32
    %12 = vector.broadcast %cst_8 : f32 to vector<64x1xf32>
    %13 = arith.divf %11, %12 : vector<64x1xf32>
    %14 = vector.broadcast %13 : vector<64x1xf32> to vector<64x128xf32>
    %15 = arith.subf %9, %14 : vector<64x128xf32>
    %16 = arith.mulf %15, %15 : vector<64x128xf32>
    %cst_9 = arith.constant dense<0.000000e+00> : vector<64xf32>
    %17 = vector.multi_reduction <add>, %16, %cst_9 [1] : vector<64x128xf32> to vector<64xf32>
    %18 = vector.shape_cast %17 : vector<64xf32> to vector<64x1xf32>
    %cst_10 = arith.constant 1.280000e+02 : f32
    %19 = vector.broadcast %cst_10 : f32 to vector<64x1xf32>
    %20 = arith.divf %18, %19 : vector<64x1xf32>
    %cst_11 = arith.constant 9.99999996E-13 : f32
    %21 = vector.broadcast %cst_11 : f32 to vector<64x1xf32>
    %22 = arith.addf %20, %21 : vector<64x1xf32>
    %23 = math.rsqrt %22 : vector<64x1xf32>
    %24 = vector.broadcast %23 : vector<64x1xf32> to vector<64x128xf32>
    %25 = arith.mulf %15, %24 : vector<64x128xf32>
    %c0_12 = arith.constant 0 : index
    %c0_13 = arith.constant 0 : index
    %26 = vector.load %arg5[%c0_12, %c0_13] : memref<1x128xf32, #tpu.memory_space<vmem>>, vector<1x128xf32>
    %27 = vector.broadcast %26 : vector<1x128xf32> to vector<64x128xf32>
    %28 = arith.mulf %25, %27 : vector<64x128xf32>
    %c0_14 = arith.constant 0 : index
    %c0_15 = arith.constant 0 : index
    %29 = vector.load %arg6[%c0_14, %c0_15] : memref<1x128xf32, #tpu.memory_space<vmem>>, vector<1x128xf32>
    %30 = vector.broadcast %29 : vector<1x128xf32> to vector<64x128xf32>
    %31 = arith.addf %28, %30 : vector<64x128xf32>
    %32 = arith.truncf %31 : vector<64x128xf32> to vector<64x128xbf16>
    %c0_16 = arith.constant 0 : index
    %c0_17 = arith.constant 0 : index
    %33 = vector.load %arg7[%c0_16, %c0_17] : memref<64x128xbf16, #tpu.memory_space<vmem>>, vector<64x128xbf16>
    tpu.vector_store %arg7[%c0_16, %c0_17], %32 {strides = array<i32>} : memref<64x128xbf16, #tpu.memory_space<vmem>>, vector<64x128xbf16>,
    return
  }
  func.func @transform_0(%arg0: i32) -> (i32, i32) {
    %c0_i32 = arith.constant 0 : i32
    %c0_i32_0 = arith.constant 0 : i32
    return %arg0, %c0_i32 : i32, i32
  }
  func.func @transform_1(%arg0: i32) -> (i32, i32) {
    %c0_i32 = arith.constant 0 : i32
    %c0_i32_0 = arith.constant 0 : i32
    return %arg0, %c0_i32 : i32, i32
  }
  func.func @transform_2(%arg0: i32) -> (i32, i32) {
    %c0_i32 = arith.constant 0 : i32
    %c0_i32_0 = arith.constant 0 : i32
    %c0_i32_1 = arith.constant 0 : i32
    return %c0_i32, %c0_i32_0 : i32, i32
  }
  func.func @transform_3(%arg0: i32) -> (i32, i32) {
    %c0_i32 = arith.constant 0 : i32
    %c0_i32_0 = arith.constant 0 : i32
    %c0_i32_1 = arith.constant 0 : i32
    return %c0_i32, %c0_i32_0 : i32, i32
  }
  func.func @transform_4(%arg0: i32) -> (i32, i32) {
    %c0_i32 = arith.constant 0 : i32
    %c0_i32_0 = arith.constant 0 : i32
    %c0_i32_1 = arith.constant 0 : i32
    return %c0_i32, %c0_i32_0 : i32, i32
  }
  func.func @transform_5(%arg0: i32) -> (i32, i32) {
    %c0_i32 = arith.constant 0 : i32
    %c0_i32_0 = arith.constant 0 : i32
    %c0_i32_1 = arith.constant 0 : i32
    return %c0_i32, %c0_i32_0 : i32, i32
  }
  func.func @transform_6(%arg0: i32) -> (i32, i32) {
    %c0_i32 = arith.constant 0 : i32
    %c0_i32_0 = arith.constant 0 : i32
    return %arg0, %c0_i32 : i32, i32
  }
}

</mosaic_0001>

<llo_original>
// kernel: tpu_custom_call.1
$region0: #{tpu_custom_call.1}
  #allocation0 [shape = 'u32[]', space=smem, size = 0x4, offset = 0x4, fixed_abs, tag = 'smem constant byte address 0x4 - core index']
  #allocation1 [shape = 'u32[144,128]{1,0:T(1,128)}', space=vmem, size = 0x12000, scoped, tag = 'internal scratch']
  %s0 = inlined_call_operand.vmem [shape: bf16[128,128], index: 0, kind: input, shape index: {}]
  %s1 = inlined_call_operand.hbm [shape: bf16[128,128], index: 1, kind: input, shape index: {}, may-alias: {1,6}]
  %s2 = inlined_call_operand.vmem [shape: bf16[128,128], index: 2, kind: input, shape index: {}]
  %s3 = inlined_call_operand.vmem [shape: bf16[1,128], index: 3, kind: input, shape index: {}]
  %s4 = inlined_call_operand.hbm [shape: f32[1,128], index: 4, kind: input, shape index: {}]
  %s5 = inlined_call_operand.hbm [shape: f32[1,128], index: 5, kind: input, shape index: {}]
  %s6 = inlined_call_operand.hbm [shape: bf16[128,128], index: 6, kind: output, shape index: {}, may-alias: {1,6}]
  %s7 = sld [smem:[#allocation0]]
  $region69: #{tpu_custom_call.1} parent=0
    _
  %s9 = ssub.s32 1, %s7
  %s10 = scalar_select 0, %s9, %s7
  $region1: #{tpu_custom_call.1} parent=0
    #allocation2 [shape = 'u8[32768]{0}', space=vmem, size = 0x8000, scoped, tag = 'input window, operand 1']
    #allocation3 [shape = 's32[2]{0}', space=sflag, size = 0x8, scoped, tag = 'scoped memory for tpu_custom_call.1']
    #allocation4 [shape = 's32[2]{0}', space=sflag, size = 0x8, scoped, tag = 'scoped memory for tpu_custom_call.1']
    #allocation5 [shape = 'u8[512]{0}', space=vmem, size = 0x400, scoped, tag = 'input window, operand 4, single buffered']
    #allocation6 [shape = 's32[1]{0}', space=sflag, size = 0x4, scoped, tag = 'scoped memory for tpu_custom_call.1']
    #allocation7 [shape = 'u8[512]{0}', space=vmem, size = 0x400, scoped, tag = 'input window, operand 5, single buffered']
    #allocation8 [shape = 'u8[32768]{0}', space=vmem, size = 0x8000, scoped, tag = 'output window, operand 0']
    %11 = vsyncpa [#allocation3], 0
    %s12 = scalar_lea.sflag [#allocation3], 1
    %13 = vsyncpa %s12, 0
    %14 = vsyncpa [#allocation6], 0
    %15 = vsyncpa [#allocation4], 0
    %s16 = scalar_lea.sflag [#allocation4], 1
    %17 = vsyncpa %s16, 0
    loop: start=0, step=1, limit=4
    $region2: #{tpu_custom_call.1} parent=1 // loop_pre_header
      _
    $region3: #{tpu_custom_call.1} parent=1 // loop_header
      %s19 = sphi 0, %s23
      %p20 = scmp.ge.s32.totalorder %s19, 4
      %s29 = sphi 0, %s31
      %s32 = sphi 0, %s29
      %s33 = sphi 0, %s32
      %s49 = sphi 0, %s33
      %s55 = sphi 0, %s57
      %s58 = sphi 0, %s55
      %s59 = sphi 0, %s58
      %s75 = sphi 0, %s59
      %s79 = sphi 0, %s79
      %s81 = sphi 0, %s79
      %s82 = sphi 0, %s81
      %s96 = sphi 0, %s82
      %s100 = sphi 0, %s100
      %s102 = sphi 0, %s100
      %s103 = sphi 0, %s102
      %s117 = sphi 0, %s103
      %s121 = sphi 0, %s121
      %s123 = sphi 0, %s121
      %s124 = sphi 0, %s123
      %s138 = sphi 0, %s124
      %s142 = sphi 0, %s142
      %s144 = sphi 0, %s142
      %s145 = sphi 0, %s144
      %s159 = sphi 0, %s145
      %s165 = sphi 0, %s167
      %s168 = sphi 0, %s165
      %s169 = sphi 0, %s168
      %s185 = sphi 0, %s169
    $region4: #{tpu_custom_call.1} parent=1 // loop_header_branch
      %22 = sbr.rel (%p20) target = $region8
    $region5: #{tpu_custom_call.1} parent=1 // loop_body
      %s24 = ssub.s32 %s19, 1
      %s25 = ssub.s32 %s19, 2
      %s26 = sadd.s32 %s19, 1
      %s27 = ssub.s32 %s19, %s26
      %p28 = scmp.eq.s32.totalorder %s27, 0
      %s30 = sadd.s32 %s29, 1
      %s31 = scalar_select %p28, %s29, %s30
      %p34 = pneg %p28
      %p35 = scmp.eq.s32.totalorder %s19, 1
      %p36 = por %p34, %p35
      %p37 = scmp.ne.s32.totalorder %s29, %s32
      %p38 = scmp.eq.s32.totalorder %s19, 0
      %p39 = por %p37, %p38
      %p40 = scmp.ne.s32.totalorder %s29, %s32
      %p41 = scmp.eq.s32.totalorder %s24, 1
      %p42 = por %p40, %p41
      %p43 = scmp.ne.s32.totalorder %s32, %s33
      %p44 = scmp.eq.s32.totalorder %s24, 0
      %p45 = por %p43, %p44
      %p46 = scmp.ne.s32.totalorder %s32, %s33
      %p47 = scmp.eq.s32.totalorder %s25, 1
      %p48 = por %p46, %p47
      %p50 = scmp.ne.s32.totalorder %s33, %s49
      %p51 = scmp.eq.s32.totalorder %s25, 0
      %p52 = por %p50, %p51
      %s53 = ssub.s32 %s19, %s26
      %p54 = scmp.eq.s32.totalorder %s53, 0
      %s56 = sadd.s32 %s55, 1
      %s57 = scalar_select %p54, %s55, %s56
      %p60 = pneg %p54
      %p61 = scmp.eq.s32.totalorder %s19, 1
      %p62 = por %p60, %p61
      %p63 = scmp.ne.s32.totalorder %s55, %s58
      %p64 = scmp.eq.s32.totalorder %s19, 0
      %p65 = por %p63, %p64
      %p66 = scmp.ne.s32.totalorder %s55, %s58
      %p67 = scmp.eq.s32.totalorder %s24, 1
      %p68 = por %p66, %p67
      %p69 = scmp.ne.s32.totalorder %s58, %s59
      %p70 = scmp.eq.s32.totalorder %s24, 0
      %p71 = por %p69, %p70
      %p72 = scmp.ne.s32.totalorder %s58, %s59
      %p73 = scmp.eq.s32.totalorder %s25, 1
      %p74 = por %p72, %p73
      %p76 = scmp.ne.s32.totalorder %s59, %s75
      %p77 = scmp.eq.s32.totalorder %s25, 0
      %p78 = por %p76, %p77
      %s80 = sadd.s32 %s79, 1
      %p83 = scmp.eq.s32.totalorder %s19, 1
      %p84 = scmp.ne.s32.totalorder %s79, %s81
      %p85 = scmp.eq.s32.totalorder %s19, 0
      %p86 = por %p84, %p85
      %p87 = scmp.ne.s32.totalorder %s79, %s81
      %p88 = scmp.eq.s32.totalorder %s24, 1
      %p89 = por %p87, %p88
      %p90 = scmp.ne.s32.totalorder %s81, %s82
      %p91 = scmp.eq.s32.totalorder %s24, 0
      %p92 = por %p90, %p91
      %p93 = scmp.ne.s32.totalorder %s81, %s82
      %p94 = scmp.eq.s32.totalorder %s25, 1
      %p95 = por %p93, %p94
      %p97 = scmp.ne.s32.totalorder %s82, %s96
      %p98 = scmp.eq.s32.totalorder %s25, 0
      %p99 = por %p97, %p98
      %s101 = sadd.s32 %s100, 1
      %p104 = scmp.eq.s32.totalorder %s19, 1
      %p105 = scmp.ne.s32.totalorder %s100, %s102
      %p106 = scmp.eq.s32.totalorder %s19, 0
      %p107 = por %p105, %p106
      %p108 = scmp.ne.s32.totalorder %s100, %s102
      %p109 = scmp.eq.s32.totalorder %s24, 1
      %p110 = por %p108, %p109
      %p111 = scmp.ne.s32.totalorder %s102, %s103
      %p112 = scmp.eq.s32.totalorder %s24, 0
      %p113 = por %p111, %p112
      %p114 = scmp.ne.s32.totalorder %s102, %s103
      %p115 = scmp.eq.s32.totalorder %s25, 1
      %p116 = por %p114, %p115
      %p118 = scmp.ne.s32.totalorder %s103, %s117
      %p119 = scmp.eq.s32.totalorder %s25, 0
      %p120 = por %p118, %p119
      %s122 = sadd.s32 %s121, 1
      %p125 = scmp.eq.s32.totalorder %s19, 1
      %p126 = scmp.ne.s32.totalorder %s121, %s123
      %p127 = scmp.eq.s32.totalorder %s19, 0
      %p128 = por %p126, %p127
      %p129 = scmp.ne.s32.totalorder %s121, %s123
      %p130 = scmp.eq.s32.totalorder %s24, 1
      %p131 = por %p129, %p130
      %p132 = scmp.ne.s32.totalorder %s123, %s124
      %p133 = scmp.eq.s32.totalorder %s24, 0
      %p134 = por %p132, %p133
      %p135 = scmp.ne.s32.totalorder %s123, %s124
      %p136 = scmp.eq.s32.totalorder %s25, 1
      %p137 = por %p135, %p136
      %p139 = scmp.ne.s32.totalorder %s124, %s138
      %p140 = scmp.eq.s32.totalorder %s25, 0
      %p141 = por %p139, %p140
      %s143 = sadd.s32 %s142, 1
      %p146 = scmp.eq.s32.totalorder %s19, 1
      %p147 = scmp.ne.s32.totalorder %s142, %s144
      %p148 = scmp.eq.s32.totalorder %s19, 0
      %p149 = por %p147, %p148
      %p150 = scmp.ne.s32.totalorder %s142, %s144
      %p151 = scmp.eq.s32.totalorder %s24, 1
      %p152 = por %p150, %p151
      %p153 = scmp.ne.s32.totalorder %s144, %s145
      %p154 = scmp.eq.s32.totalorder %s24, 0
      %p155 = por %p153, %p154
      %p156 = scmp.ne.s32.totalorder %s144, %s145
      %p157 = scmp.eq.s32.totalorder %s25, 1
      %p158 = por %p156, %p157
      %p160 = scmp.ne.s32.totalorder %s145, %s159
      %p161 = scmp.eq.s32.totalorder %s25, 0
      %p162 = por %p160, %p161
      %s163 = ssub.s32 %s19, %s26
      %p164 = scmp.eq.s32.totalorder %s163, 0
      %s166 = sadd.s32 %s165, 1
      %s167 = scalar_select %p164, %s165, %s166
      %p170 = pneg %p164
      %p171 = scmp.eq.s32.totalorder %s19, 1
      %p172 = por %p170, %p171
      %p173 = scmp.ne.s32.totalorder %s165, %s168
      %p174 = scmp.eq.s32.totalorder %s19, 0
      %p175 = por %p173, %p174
      %p176 = scmp.ne.s32.totalorder %s165, %s168
      %p177 = scmp.eq.s32.totalorder %s24, 1
      %p178 = por %p176, %p177
      %p179 = scmp.ne.s32.totalorder %s168, %s169
      %p180 = scmp.eq.s32.totalorder %s24, 0
      %p181 = por %p179, %p180
      %p182 = scmp.ne.s32.totalorder %s168, %s169
      %p183 = scmp.eq.s32.totalorder %s25, 1
      %p184 = por %p182, %p183
      %p186 = scmp.ne.s32.totalorder %s169, %s185
      %p187 = scmp.eq.s32.totalorder %s25, 0
      %p188 = por %p186, %p187
      %p189 = scmp.le.s32.totalorder 1, %s19
      %p190 = scmp.lt.s32.totalorder %s19, 3
      %p191 = pnand %p189, %p190
      %p192 = pneg %p191
      // Predicated region
      $region9: #{tpu_custom_call.1} parent=5 // pred_check
        _
      $region10: #{tpu_custom_call.1} parent=5 // pred_check_branch
        %194 = sbr.rel (%p191) target = $region12
      $region11: #{tpu_custom_call.1} parent=5 // pred_region
        %s195 = ssub.s32 %s19, 1
        // Predicated region
        $region13: #{tpu_custom_call.1} parent=11 // pred_check
          %p196 = pneg %p92
        $region14: #{tpu_custom_call.1} parent=11 // pred_check_branch
          %198 = sbr.rel (%p196) target = $region16
        $region15: #{tpu_custom_call.1} parent=11 // pred_region
          _
        $region16: #{tpu_custom_call.1} parent=11 // pred_fallthru
          _
        // Predicated region
        $region17: #{tpu_custom_call.1} parent=11 // pred_check
          %p199 = pneg %p113
        $region18: #{tpu_custom_call.1} parent=11 // pred_check_branch
          %201 = sbr.rel (%p199) target = $region20
        $region19: #{tpu_custom_call.1} parent=11 // pred_region
          _
        $region20: #{tpu_custom_call.1} parent=11 // pred_fallthru
          _
        // Predicated region
        $region21: #{tpu_custom_call.1} parent=11 // pred_check
          %p202 = pneg %p134
        $region22: #{tpu_custom_call.1} parent=11 // pred_check_branch
          %204 = sbr.rel (%p202) target = $region24
        $region23: #{tpu_custom_call.1} parent=11 // pred_region
          %s206 = ssub.s32 16, 16
          %207 = vsyncadd [#allocation6], %s206
          %s209 = sshll.u32 [#allocation5], 4
          %s210 = int_to_ptr.vmem [resolvable:$true] %s209
          %212 = dma.hbm_to_vmem [thread:$0]  %s4, 16, %s210, [#allocation6]
        $region24: #{tpu_custom_call.1} parent=11 // pred_fallthru
          _
        // Predicated region
        $region25: #{tpu_custom_call.1} parent=11 // pred_check
          %p213 = pneg %p155
        $region26: #{tpu_custom_call.1} parent=11 // pred_check_branch
          %215 = sbr.rel (%p213) target = $region28
        $region27: #{tpu_custom_call.1} parent=11 // pred_region
          %s217 = ssub.s32 16, 16
          %218 = vsyncadd [#allocation6], %s217
          %s220 = sshll.u32 [#allocation7], 4
          %s221 = int_to_ptr.vmem [resolvable:$true] %s220
          %223 = dma.hbm_to_vmem [thread:$0]  %s5, 16, %s221, [#allocation6]
        $region28: #{tpu_custom_call.1} parent=11 // pred_fallthru
          _
      $region12: #{tpu_custom_call.1} parent=5 // pred_fallthru
        _
      %p224 = scmp.lt.s32.totalorder %s19, 2
      // Predicated region
      $region29: #{tpu_custom_call.1} parent=5 // pred_check
        %p225 = pneg %p224
      $region30: #{tpu_custom_call.1} parent=5 // pred_check_branch
        %227 = sbr.rel (%p225) target = $region32
      $region31: #{tpu_custom_call.1} parent=5 // pred_region
        // Predicated region
        $region33: #{tpu_custom_call.1} parent=31 // pred_check
          %p228 = pneg %p39
        $region34: #{tpu_custom_call.1} parent=31 // pred_check_branch
          %230 = sbr.rel (%p228) target = $region36
        $region35: #{tpu_custom_call.1} parent=31 // pred_region
          %s231 = smul.u32 8, %s19
          %p232 = scmp.lt.s32.totalorder %s231, 15
          %s233 = scalar_select %p232, %s231, 15
          %s234 = smul.addr %s233, 4
          %s235 = scalar_lea.vmem %s0, %s234
          %s236 = smul.u32 8, %s19
        $region36: #{tpu_custom_call.1} parent=31 // pred_fallthru
          _
        // Predicated region
        $region37: #{tpu_custom_call.1} parent=31 // pred_check
          %p237 = pneg %p65
        $region38: #{tpu_custom_call.1} parent=31 // pred_check_branch
          %239 = sbr.rel (%p237) target = $region40
        $region39: #{tpu_custom_call.1} parent=31 // pred_region
          %s240 = sand.u32 %s55, 1
          %s241 = scalar_lea.sflag [#allocation3], %s240
          %s242 = sand.u32 %s55, 1
          %s243 = smul.addr %s242, 32
          %s244 = scalar_lea.vmem [#allocation2], %s243
          %s245 = smul.u32 8, %s19
          %s247 = ssub.s32 512, 512
          %248 = vsyncadd %s241, %s247
          %s249 = smul.addr %s245, 64
          %s250 = scalar_lea.hbm %s1, %s249
          %s251 = sshll.u32 %s244, 4
          %s252 = int_to_ptr.vmem [resolvable:$true] %s251
          %257 = dma.hbm_to_vmem [thread:$0]  %s250, 512, %s252, %s241, 64, 64, 4
        $region40: #{tpu_custom_call.1} parent=31 // pred_fallthru
          _
      $region32: #{tpu_custom_call.1} parent=5 // pred_fallthru
        _
      %p258 = scmp.le.s32.totalorder 1, %s19
      %p259 = scmp.lt.s32.totalorder %s19, 3
      %p260 = pnand %p258, %p259
      %p261 = pneg %p260
      // Predicated region
      $region41: #{tpu_custom_call.1} parent=5 // pred_check
        _
      $region42: #{tpu_custom_call.1} parent=5 // pred_check_branch
        %263 = sbr.rel (%p260) target = $region44
      $region43: #{tpu_custom_call.1} parent=5 // pred_region
        %s264 = ssub.s32 %s19, 1
        %s265 = sand.u32 %s58, 1
        %s266 = scalar_lea.sflag [#allocation3], %s265
        %s267 = sand.u32 %s58, 1
        %s268 = smul.addr %s267, 32
        %s269 = scalar_lea.vmem [#allocation2], %s268
        // Predicated region
        $region45: #{tpu_custom_call.1} parent=43 // pred_check
          %p270 = pneg %p71
        $region46: #{tpu_custom_call.1} parent=43 // pred_check_branch
          %272 = sbr.rel (%p270) target = $region48
        $region47: #{tpu_custom_call.1} parent=43 // pred_region
          %273 = dma.done %s266, 512
        $region48: #{tpu_custom_call.1} parent=43 // pred_fallthru
          _
        // Predicated region
        $region49: #{tpu_custom_call.1} parent=43 // pred_check
          %p274 = pneg %p134
        $region50: #{tpu_custom_call.1} parent=43 // pred_check_branch
          %276 = sbr.rel (%p274) target = $region52
        $region51: #{tpu_custom_call.1} parent=43 // pred_region
          %277 = dma.done [#allocation6], 16
        $region52: #{tpu_custom_call.1} parent=43 // pred_fallthru
          _
        // Predicated region
        $region53: #{tpu_custom_call.1} parent=43 // pred_check
          %p278 = pneg %p155
        $region54: #{tpu_custom_call.1} parent=43 // pred_check_branch
          %280 = sbr.rel (%p278) target = $region56
        $region55: #{tpu_custom_call.1} parent=43 // pred_region
          %281 = dma.done [#allocation6], 16
        $region56: #{tpu_custom_call.1} parent=43 // pred_fallthru
          _
        %s282 = smul.u32 8, %s24
        %p283 = scmp.lt.s32.totalorder %s282, 15
        %s284 = scalar_select %p283, %s282, 15
        %s285 = smul.addr %s284, 4
        %s286 = scalar_lea.vmem %s0, %s285
        %p287 = pneg %p45
        %p288 = pneg %p42
        %s289 = sand.u32 %s58, 1
        %s290 = scalar_lea.sflag [#allocation3], %s289
        %s291 = sand.u32 %s58, 1
        %s292 = smul.addr %s291, 32
        %s293 = scalar_lea.vmem [#allocation2], %s292
        %p294 = pneg %p71
        %p295 = pneg %p68
        %p296 = pneg %p92
        %p297 = pneg %p89
        %p298 = pneg %p113
        %p299 = pneg %p110
        %p300 = pneg %p134
        %p301 = pneg %p131
        %p302 = pneg %p155
        %p303 = pneg %p152
        %p304 = pneg %p181
        %p305 = pneg %p178
        %s306 = sand.u32 %s168, 1
        %s307 = scalar_lea.sflag [#allocation4], %s306
        %s308 = sand.u32 %s168, 1
        %s309 = smul.addr %s308, 32
        %s310 = scalar_lea.vmem [#allocation8], %s309
        %s311 = smul.u32 8, %s24
        %p312 = scmp.lt.s32.totalorder %s311, 15
        %s313 = scalar_select %p312, %s311, 15
        %s314 = smul.addr %s313, 4
        %s315 = scalar_lea.vmem %s0, %s314
        %s316 = smul.u32 8, %s24
        %s317 = smul.u32 8, %s24
        %s318 = smul.u32 8, %s24
        %v320 = vld [vmem:[%s315] sm:$0xf]
        %v321 = vld [vmem:[%s315 + $0x4] sm:$0xf]
        %v322 = vld [vmem:[%s315 + $0x8] sm:$0xf]
        %v323 = vld [vmem:[%s315 + $0xc] sm:$0xf]
        %v324 = vld [vmem:[%s315 + $0x10] sm:$0xf]
        %v325 = vld [vmem:[%s315 + $0x14] sm:$0xf]
        %v326 = vld [vmem:[%s315 + $0x18] sm:$0xf]
        %v327 = vld [vmem:[%s315 + $0x1c] sm:$0xf]
        %v328 = vld [vmem:[%s2] sm:$0xf]
        %v329 = vld [vmem:[%s2 + $0x4] sm:$0xf]
        %v330 = vld [vmem:[%s2 + $0x8] sm:$0xf]
        %v331 = vld [vmem:[%s2 + $0xc] sm:$0xf]
        %v332 = vld [vmem:[%s2 + $0x10] sm:$0xf]
        %v333 = vld [vmem:[%s2 + $0x14] sm:$0xf]
        %v334 = vld [vmem:[%s2 + $0x18] sm:$0xf]
        %v335 = vld [vmem:[%s2 + $0x1c] sm:$0xf]
        %v336 = vld [vmem:[%s2 + $0x20] sm:$0xf]
        %v337 = vld [vmem:[%s2 + $0x24] sm:$0xf]
        %v338 = vld [vmem:[%s2 + $0x28] sm:$0xf]
        %v339 = vld [vmem:[%s2 + $0x2c] sm:$0xf]
        %v340 = vld [vmem:[%s2 + $0x30] sm:$0xf]
        %v341 = vld [vmem:[%s2 + $0x34] sm:$0xf]
        %v342 = vld [vmem:[%s2 + $0x38] sm:$0xf]
        %v343 = vld [vmem:[%s2 + $0x3c] sm:$0xf]
        %v344 = vld [vmem:[%s3] sm:$0x1]
        %v345 = vunpack.c.l.bf16 %v344
        %v346 = vlaneseq
        %v347 = vshrl.u32 %v346, 7
        %v348 = vsub.s32 0, %v347
        %v349 = vrot.slane %v345, %v348
        %v358 = vunpack.c.l.b16 %v320
        %v359 = vunpack.c.l.b16 %v321
        %v360 = vunpack.c.l.b16 %v322
        %v361 = vunpack.c.l.b16 %v323
        %v362 = vunpack.c.l.b16 %v324
        %v363 = vunpack.c.l.b16 %v325
        %v364 = vunpack.c.l.b16 %v326
        %v365 = vunpack.c.l.b16 %v327
        %v366 = vpack.c.b16 %v359, %v358
        %v367 = vpack.c.b16 %v361, %v360
        %v368 = vpack.c.b16 %v363, %v362
        %v369 = vpack.c.b16 %v365, %v364
        %v390 = vunpack.c.l.b16 %v328
        %v391 = vunpack.c.l.b16 %v329
        %v392 = vunpack.c.l.b16 %v330
        %v393 = vunpack.c.l.b16 %v331
        %v394 = vunpack.c.l.b16 %v332
        %v395 = vunpack.c.l.b16 %v333
        %v396 = vunpack.c.l.b16 %v334
        %v397 = vunpack.c.l.b16 %v335
        %v398 = vunpack.c.l.b16 %v336
        %v399 = vunpack.c.l.b16 %v337
        %v400 = vunpack.c.l.b16 %v338
        %v401 = vunpack.c.l.b16 %v339
        %v402 = vunpack.c.l.b16 %v340
        %v403 = vunpack.c.l.b16 %v341
        %v404 = vunpack.c.l.b16 %v342
        %v405 = vunpack.c.l.b16 %v343
        %v406 = vpack.c.b16 %v391, %v390
        %v407 = vpack.c.b16 %v393, %v392
        %v408 = vpack.c.b16 %v395, %v394
        %v409 = vpack.c.b16 %v397, %v396
        %v410 = vpack.c.b16 %v399, %v398
        %v411 = vpack.c.b16 %v401, %v400
        %v412 = vpack.c.b16 %v403, %v402
        %v413 = vpack.c.b16 %v405, %v404
        %422 = vmatprep.subr.bf16.mxu0 0
        %423 = vmatpush1.bf16.msra.mxu0 %v413
        %424 = vmatprep.subr.bf16.mxu0 0
        %425 = vmatpush1.bf16.msra.mxu0 %v412
        %426 = vmatprep.subr.bf16.mxu0 0
        %427 = vmatpush1.bf16.msra.mxu0 %v411
        %428 = vmatprep.subr.bf16.mxu0 0
        %429 = vmatpush1.bf16.msra.mxu0 %v410
        %430 = vmatprep.subr.bf16.mxu0 0
        %431 = vmatpush1.bf16.msra.mxu0 %v409
        %432 = vmatprep.subr.bf16.mxu0 0
        %433 = vmatpush1.bf16.msra.mxu0 %v408
        %434 = vmatprep.subr.bf16.mxu0 0
        %435 = vmatpush1.bf16.msra.mxu0 %v407
        %436 = vmatprep.subr.bf16.mxu0 0
        %437 = vmatpush1.bf16.msra.mxu0 %v406
        %438 = vmatprep.subr.bf16.mxu0 0
        %439 = vmatpush2.bf16.msra.mxu0 0
        %440 = vmatprep.subr.bf16.mxu0 0
        %441 = vmatpush2.bf16.msra.mxu0 0
        %442 = vmatprep.subr.bf16.mxu0 0
        %443 = vmatpush2.bf16.msra.mxu0 0
        %444 = vmatprep.subr.bf16.mxu0 0
        %445 = vmatpush2.bf16.msra.mxu0 0
        %446 = vmatprep.subr.bf16.mxu0 0
        %447 = vmatpush2.bf16.msra.mxu0 0
        %448 = vmatprep.subr.bf16.mxu0 0
        %449 = vmatpush2.bf16.msra.mxu0 0
        %450 = vmatprep.subr.bf16.mxu0 0
        %451 = vmatpush2.bf16.msra.mxu0 0
        %452 = vmatprep.subr.bf16.mxu0 0
        %453 = vmatpush2.bf16.msra.mxu0 0
        %454 = vmatprep.mubr.bf16.mxu0 0
        %455 = vmatmul.mubr.bf16.gmra.mxu0 %v366
        %v456 = vpop.f32.mrf.mxu0
        %v457 = vadd.f32 %v349, %v456
        %v458 = vpop.f32.mrf.mxu0
        %v459 = vpop.f32.mrf.mxu0
        %v460 = vadd.f32 %v349, %v459
        %v461 = vpop.f32.mrf.mxu0
        %462 = vmatprep.mubr.bf16.mxu0 0
        %463 = vmatmul.mubr.bf16.gmra.mxu0 %v367
        %v464 = vpop.f32.mrf.mxu0
        %v465 = vadd.f32 %v349, %v464
        %v466 = vpop.f32.mrf.mxu0
        %v467 = vpop.f32.mrf.mxu0
        %v468 = vadd.f32 %v349, %v467
        %v469 = vpop.f32.mrf.mxu0
        %470 = vmatprep.mubr.bf16.mxu0 0
        %471 = vmatmul.mubr.bf16.gmra.mxu0 %v368
        %v472 = vpop.f32.mrf.mxu0
        %v473 = vadd.f32 %v349, %v472
        %v474 = vpop.f32.mrf.mxu0
        %v475 = vpop.f32.mrf.mxu0
        %v476 = vadd.f32 %v349, %v475
        %v477 = vpop.f32.mrf.mxu0
        %478 = vmatprep.mubr.bf16.mxu0 0
        %479 = vmatmul.mubr.bf16.gmra.mxu0 %v369
        %v480 = vpop.f32.mrf.mxu0
        %v481 = vadd.f32 %v349, %v480
        %v482 = vpop.f32.mrf.mxu0
        %v483 = vpop.f32.mrf.mxu0
        %v484 = vadd.f32 %v349, %v483
        %v485 = vpop.f32.mrf.mxu0
        %486 = vdwg.mxu0
        %v487 = vld [vmem:[%s269] sm:$0xf]
        %v488 = vld [vmem:[%s269 + $0x4] sm:$0xf]
        %v489 = vld [vmem:[%s269 + $0x8] sm:$0xf]
        %v490 = vld [vmem:[%s269 + $0xc] sm:$0xf]
        %v491 = vld [vmem:[%s269 + $0x10] sm:$0xf]
        %v492 = vld [vmem:[%s269 + $0x14] sm:$0xf]
        %v493 = vld [vmem:[%s269 + $0x18] sm:$0xf]
        %v494 = vld [vmem:[%s269 + $0x1c] sm:$0xf]
        %v495 = vunpack.c.l.bf16 %v487
        %v496 = vunpack.c.l.bf16 %v488
        %v497 = vunpack.c.l.bf16 %v489
        %v498 = vunpack.c.l.bf16 %v490
        %v499 = vunpack.c.l.bf16 %v491
        %v500 = vunpack.c.l.bf16 %v492
        %v501 = vunpack.c.l.bf16 %v493
        %v502 = vunpack.c.l.bf16 %v494
        %v503 = vadd.f32 %v457, %v495
        %v504 = vadd.f32 %v460, %v496
        %v505 = vadd.f32 %v465, %v497
        %v506 = vadd.f32 %v468, %v498
        %v507 = vadd.f32 %v473, %v499
        %v508 = vadd.f32 %v476, %v500
        %v509 = vadd.f32 %v481, %v501
        %v510 = vadd.f32 %v484, %v502
        %511 = vadd.xlane.f32.xlu0 %v503
        %v512 = vpop.xlane.xlu0 %511
        %513 = vadd.xlane.f32.xlu0 %v504
        %v514 = vpop.xlane.xlu0 %513
        %515 = vadd.xlane.f32.xlu0 %v505
        %v516 = vpop.xlane.xlu0 %515
        %517 = vadd.xlane.f32.xlu0 %v506
        %v518 = vpop.xlane.xlu0 %517
        %519 = vadd.xlane.f32.xlu0 %v507
        %v520 = vpop.xlane.xlu0 %519
        %521 = vadd.xlane.f32.xlu0 %v508
        %v522 = vpop.xlane.xlu0 %521
        %523 = vadd.xlane.f32.xlu0 %v509
        %v524 = vpop.xlane.xlu0 %523
        %525 = vadd.xlane.f32.xlu0 %v510
        %v526 = vpop.xlane.xlu0 %525
        %v527 = vrcp.pop 128.0
        %v528 = vmul.f32 %v512, %v527
        %v529 = vmul.f32 %v514, %v527
        %v530 = vmul.f32 %v516, %v527
        %v531 = vmul.f32 %v518, %v527
        %v532 = vmul.f32 %v520, %v527
        %v533 = vmul.f32 %v522, %v527
        %v534 = vmul.f32 %v524, %v527
        %v535 = vmul.f32 %v526, %v527
        %v536 = vsub.f32 %v503, %v528
        %v537 = vsub.f32 %v504, %v529
        %v538 = vsub.f32 %v505, %v530
        %v539 = vsub.f32 %v506, %v531
        %v540 = vsub.f32 %v507, %v532
        %v541 = vsub.f32 %v508, %v533
        %v542 = vsub.f32 %v509, %v534
        %v543 = vsub.f32 %v510, %v535
        %v544 = vmul.f32 %v536, %v536
        %v545 = vmul.f32 %v537, %v537
        %v546 = vmul.f32 %v538, %v538
        %v547 = vmul.f32 %v539, %v539
        %v548 = vmul.f32 %v540, %v540
        %v549 = vmul.f32 %v541, %v541
        %v550 = vmul.f32 %v542, %v542
        %v551 = vmul.f32 %v543, %v543
        %552 = vadd.xlane.f32.xlu0 %v544
        %v553 = vpop.xlane.xlu0 %552
        %554 = vadd.xlane.f32.xlu0 %v545
        %v555 = vpop.xlane.xlu0 %554
        %556 = vadd.xlane.f32.xlu0 %v546
        %v557 = vpop.xlane.xlu0 %556
        %558 = vadd.xlane.f32.xlu0 %v547
        %v559 = vpop.xlane.xlu0 %558
        %560 = vadd.xlane.f32.xlu0 %v548
        %v561 = vpop.xlane.xlu0 %560
        %562 = vadd.xlane.f32.xlu0 %v549
        %v563 = vpop.xlane.xlu0 %562
        %564 = vadd.xlane.f32.xlu0 %v550
        %v565 = vpop.xlane.xlu0 %564
        %566 = vadd.xlane.f32.xlu0 %v551
        %v567 = vpop.xlane.xlu0 %566
        %v568 = vmul.f32 %v553, %v527
        %v569 = vmul.f32 %v555, %v527
        %v570 = vmul.f32 %v557, %v527
        %v571 = vmul.f32 %v559, %v527
        %v572 = vmul.f32 %v561, %v527
        %v573 = vmul.f32 %v563, %v527
        %v574 = vmul.f32 %v565, %v527
        %v575 = vmul.f32 %v567, %v527
        %v576 = vadd.f32 %v568, 1e-12
        %v577 = vadd.f32 %v569, 1e-12
        %v578 = vadd.f32 %v570, 1e-12
        %v579 = vadd.f32 %v571, 1e-12
        %v580 = vadd.f32 %v572, 1e-12
        %v581 = vadd.f32 %v573, 1e-12
        %v582 = vadd.f32 %v574, 1e-12
        %v583 = vadd.f32 %v575, 1e-12
        %v584 = vrsqrt.pop %v576
        %v585 = vrsqrt.pop %v577
        %v586 = vrsqrt.pop %v578
        %v587 = vrsqrt.pop %v579
        %v588 = vrsqrt.pop %v580
        %v589 = vrsqrt.pop %v581
        %v590 = vrsqrt.pop %v582
        %v591 = vrsqrt.pop %v583
        %v592 = vmul.f32 %v536, %v584
        %v593 = vmul.f32 %v537, %v585
        %v594 = vmul.f32 %v538, %v586
        %v595 = vmul.f32 %v539, %v587
        %v596 = vmul.f32 %v540, %v588
        %v597 = vmul.f32 %v541, %v589
        %v598 = vmul.f32 %v542, %v590
        %v599 = vmul.f32 %v543, %v591
        %v600 = vld [vmem:[#allocation5] sm:$0x1]
        %v602 = vlaneseq
        %v603 = vshrl.u32 %v602, 7
        %v604 = vsub.s32 0, %v603
        %v605 = vrot.slane %v600, %v604
        %v607 = vmul.f32 %v592, %v605
        %v608 = vmul.f32 %v593, %v605
        %v609 = vmul.f32 %v594, %v605
        %v610 = vmul.f32 %v595, %v605
        %v611 = vmul.f32 %v596, %v605
        %v612 = vmul.f32 %v597, %v605
        %v613 = vmul.f32 %v598, %v605
        %v614 = vmul.f32 %v599, %v605
        %v615 = vld [vmem:[#allocation7] sm:$0x1]
        %v617 = vlaneseq
        %v618 = vshrl.u32 %v617, 7
        %v619 = vsub.s32 0, %v618
        %v620 = vrot.slane %v615, %v619
        %v622 = vadd.f32 %v607, %v620
        %v623 = vadd.f32 %v608, %v620
        %v624 = vadd.f32 %v609, %v620
        %v625 = vadd.f32 %v610, %v620
        %v626 = vadd.f32 %v611, %v620
        %v627 = vadd.f32 %v612, %v620
        %v628 = vadd.f32 %v613, %v620
        %v629 = vadd.f32 %v614, %v620
        %v630 = vpack.c.bf16 %v623, %v622
        %v631 = vpack.c.bf16 %v625, %v624
        %v632 = vpack.c.bf16 %v627, %v626
        %v633 = vpack.c.bf16 %v629, %v628
        %v638 = vunpack.c.l.b16 %v630
        %v639 = vunpack.c.h.b16 %v630
        %v640 = vunpack.c.l.b16 %v631
        %v641 = vunpack.c.h.b16 %v631
        %v642 = vunpack.c.l.b16 %v632
        %v643 = vunpack.c.h.b16 %v632
        %v644 = vunpack.c.l.b16 %v633
        %v645 = vunpack.c.h.b16 %v633
        %v646 = vpack.c.b16 %v638, %v638
        %v647 = vpack.c.b16 %v639, %v639
        %v648 = vpack.c.b16 %v640, %v640
        %v649 = vpack.c.b16 %v641, %v641
        %v650 = vpack.c.b16 %v642, %v642
        %v651 = vpack.c.b16 %v643, %v643
        %v652 = vpack.c.b16 %v644, %v644
        %v653 = vpack.c.b16 %v645, %v645
        %662 = vst [vmem:[%s310] sm:$0xf] %v646
        %663 = vst [vmem:[%s310 + $0x4] sm:$0xf] %v647
        %664 = vst [vmem:[%s310 + $0x8] sm:$0xf] %v648
        %665 = vst [vmem:[%s310 + $0xc] sm:$0xf] %v649
        %666 = vst [vmem:[%s310 + $0x10] sm:$0xf] %v650
        %667 = vst [vmem:[%s310 + $0x14] sm:$0xf] %v651
        %668 = vst [vmem:[%s310 + $0x18] sm:$0xf] %v652
        %669 = vst [vmem:[%s310 + $0x1c] sm:$0xf] %v653
        %s670 = sand.u32 %s168, 1
        %s671 = scalar_lea.sflag [#allocation4], %s670
        %s672 = sand.u32 %s168, 1
        %s673 = smul.addr %s672, 32
        %s674 = scalar_lea.vmem [#allocation8], %s673
        // Predicated region
        $region57: #{tpu_custom_call.1} parent=43 // pred_check
          %p675 = pneg %p178
        $region58: #{tpu_custom_call.1} parent=43 // pred_check_branch
          %677 = sbr.rel (%p675) target = $region60
        $region59: #{tpu_custom_call.1} parent=43 // pred_region
          %s678 = smul.u32 8, %s24
          %s680 = ssub.s32 512, 512
          %681 = vsyncadd %s671, %s680
          %s682 = smul.addr %s678, 64
          %s683 = scalar_lea.hbm %s6, %s682
          %s684 = sshll.u32 %s674, 4
          %s685 = int_to_ptr.vmem [resolvable:$true] %s684
          %690 = dma.vmem_to_hbm [thread:$0]  %s685, 512, %s683, %s671, 64, 64, 4
        $region60: #{tpu_custom_call.1} parent=43 // pred_fallthru
          _
      $region44: #{tpu_custom_call.1} parent=5 // pred_fallthru
        _
      %p691 = scmp.le.s32.totalorder 2, %s19
      // Predicated region
      $region61: #{tpu_custom_call.1} parent=5 // pred_check
        %p692 = pneg %p691
      $region62: #{tpu_custom_call.1} parent=5 // pred_check_branch
        %694 = sbr.rel (%p692) target = $region64
      $region63: #{tpu_custom_call.1} parent=5 // pred_region
        %s695 = ssub.s32 %s19, 2
        // Predicated region
        $region65: #{tpu_custom_call.1} parent=63 // pred_check
          %p696 = pneg %p184
        $region66: #{tpu_custom_call.1} parent=63 // pred_check_branch
          %698 = sbr.rel (%p696) target = $region68
        $region67: #{tpu_custom_call.1} parent=63 // pred_region
          %s699 = sand.u32 %s169, 1
          %s700 = scalar_lea.sflag [#allocation4], %s699
          %s701 = sand.u32 %s169, 1
          %s702 = smul.addr %s701, 32
          %s703 = scalar_lea.vmem [#allocation8], %s702
          %704 = dma.done %s700, 512
        $region68: #{tpu_custom_call.1} parent=63 // pred_fallthru
          _
      $region64: #{tpu_custom_call.1} parent=5 // pred_fallthru
        _
    $region6: #{tpu_custom_call.1} parent=1 // loop_footer
      %s23 = sadd.s32 1, %s19
    $region7: #{tpu_custom_call.1} parent=1 // loop_footer_branch
      %18 = sbr.rel target = $region3
    $region8: #{tpu_custom_call.1} parent=1 // loop_exit
      _
    %705 = vsyncpa [#allocation3], 1
    %s706 = scalar_lea.sflag [#allocation3], 1
    %707 = vsyncpa %s706, 1
    %708 = vsyncpa [#allocation6], 1
    %709 = vsyncpa [#allocation4], 1
    %s710 = scalar_lea.sflag [#allocation4], 1
    %711 = vsyncpa %s710, 1

</llo_original>
